<compile_context>
chip_gen: v6e
topology: v6e:2x2x1
jax: 0.10.0
libtpu: 0.0.40
codegen_flags: <defaults>
</compile_context>

<pallas_src>
import functools

import jax
import jax.numpy as jnp
from jax.experimental import pallas as pl
from jax.experimental.pallas import tpu as pltpu

FEAT_DIM = 768   # self.feat_dim in the PyTorch module
LANES = 128
SUBLANES = 8
LN_EPS = 1e-5    # match torch.nn.LayerNorm default eps


def _round_up(x, m):
    return ((x + m - 1) // m) * m


# ---------------------------------------------------------------------------
# Fused kernel: synthetic encoder stub + linear head.
#
#   pooled = mean_n(patches)                    (mean commutes with the linear
#   emb    = pooled @ Wp + bp                    patch embed -> no (B,N,768))
#   feats  = layernorm(emb) * gamma + beta       (f32 on VPU/EUP)
#   out    = feats @ head_W^T + head_b           (classes padded to 128 lanes)
# ---------------------------------------------------------------------------
def _blip2lp_kernel(patches_ref, wp_ref, bp_ref, gamma_ref, beta_ref,
                    hw_ref, hb_ref, out_ref):
    # patches_ref: (TILE_B, N, Pd_pad) bf16  -> pool over patches in f32.
    pooled = jnp.mean(patches_ref[...].astype(jnp.float32), axis=1)
    # Patch-embed matmul on the MXU: bf16 operands, f32 accumulate.
    emb = jnp.dot(pooled.astype(jnp.bfloat16), wp_ref[...],
                  preferred_element_type=jnp.float32) + bp_ref[...]
    # LayerNorm in f32 (CLS-proxy features).
    mu = jnp.mean(emb, axis=-1, keepdims=True)
    var = jnp.mean((emb - mu) ** 2, axis=-1, keepdims=True)
    feats = (emb - mu) * jax.lax.rsqrt(var + LN_EPS)
    feats = feats * gamma_ref[...] + beta_ref[...]
    # Fused linear head; single lane-dense (TILE_B, 128) store.
    out_ref[...] = (jnp.dot(feats.astype(jnp.bfloat16), hw_ref[...],
                            preferred_element_type=jnp.float32)
                    + hb_ref[...])


# ---------------------------------------------------------------------------
# Plain-JAX glue
# ---------------------------------------------------------------------------
def _patchify(x, patch):
    """NCHW image -> (B, num_patches, C*patch*patch)."""
    B, C, H, W = x.shape
    gh, gw = H // patch, W // patch
    x = x.reshape(B, C, gh, patch, gw, patch)
    x = jnp.transpose(x, (0, 2, 4, 1, 3, 5))        # (B, gh, gw, C, p, p)
    return x.reshape(B, gh * gw, C * patch * patch)


def blip2lp_forward(x, params, img_hw, patch, num_classes):
    """Mirrors BLIP2LP.forward: x.view(-1,3,H,W) -> features -> head (x2)."""
    H, W = img_hw
    x = x.reshape(-1, 3, H, W)                       # x.view(-1, 3, 224, 224)
    patches = _patchify(x, patch)                    # (B, N, Pd) f32
    B, N, Pd = patches.shape

    pd_pad = _round_up(Pd, LANES)                    # aligned contraction dim
    c_pad = _round_up(num_classes, LANES)            # lane-dense output
    tile_b = min(128, _round_up(B, SUBLANES))        # batch tile (mult. of 8)
    b_pad = _round_up(B, tile_b)

    # Zero padding is exact; bf16 only on MXU operands.
    patches_p = jnp.pad(
        patches, ((0, b_pad - B), (0, 0), (0, pd_pad - Pd))
    ).astype(jnp.bfloat16)
    wp_p = jnp.pad(params["wp"],
                   ((0, pd_pad - Pd), (0, 0))).astype(jnp.bfloat16)
    hw_p = jnp.pad(params["head_w_t"],
                   ((0, 0), (0, c_pad - num_classes))).astype(jnp.bfloat16)
    hb_p = jnp.pad(params["head_b"], ((0, 0), (0, c_pad - num_classes)))

    grid = (b_pad // tile_b,)

    flops = 2 * b_pad * (pd_pad * FEAT_DIM + FEAT_DIM * c_pad)
    bytes_accessed = (patches_p.size * 2 + wp_p.size * 2 + hw_p.size * 2
                      + (params["bp"].size + params["gamma"].size
                         + params["beta"].size + hb_p.size) * 4
                      + b_pad * c_pad * 4)

    out_padded = pl.pallas_call(
        _blip2lp_kernel,
        out_shape=jax.ShapeDtypeStruct((b_pad, c_pad), jnp.float32),
        grid=grid,
        in_specs=[
            pl.BlockSpec((tile_b, N, pd_pad), lambda i: (i, 0, 0)),   # patches
            pl.BlockSpec((pd_pad, FEAT_DIM), lambda i: (0, 0)),       # Wp
            pl.BlockSpec((1, FEAT_DIM), lambda i: (0, 0)),            # bp
            pl.BlockSpec((1, FEAT_DIM), lambda i: (0, 0)),            # gamma
            pl.BlockSpec((1, FEAT_DIM), lambda i: (0, 0)),            # beta
            pl.BlockSpec((FEAT_DIM, c_pad), lambda i: (0, 0)),        # head W^T
            pl.BlockSpec((1, c_pad), lambda i: (0, 0)),               # head b
        ],
        out_specs=pl.BlockSpec((tile_b, c_pad), lambda i: (i, 0)),
        compiler_params=pltpu.CompilerParams(
            dimension_semantics=("parallel",)),
        cost_estimate=pl.CostEstimate(
            flops=int(flops),
            transcendentals=int(b_pad),
            bytes_accessed=int(bytes_accessed)),
    )(patches_p, wp_p, params["bp"], params["gamma"], params["beta"],
      hw_p, hb_p)

    output = out_padded[:B, :num_classes]
    # The PyTorch forward applies self.head(y) twice on the same y, so
    # out == jvp by construction: alias it instead of re-storing from kernel.
    return output, output


# ---------------------------------------------------------------------------
# Main
# ---------------------------------------------------------------------------
if __name__ == "__main__":
    # Small, module-consistent shapes: batch=2, RGB images, feat_dim=768.
    B = 2
    H = W = 32          # small stand-in for 224
    PATCH = 8
    NUM_CLASSES = 16

    key = jax.random.PRNGKey(0)
    kx, kwp, khw, khb = jax.random.split(key, 4)

    x = jax.random.normal(kx, (B, 3, H, W), dtype=jnp.float32)

    pd = 3 * PATCH * PATCH
    params = {
        # synthetic frozen-encoder parameters
        "wp": jax.random.normal(kwp, (pd, FEAT_DIM), jnp.float32) * 0.02,
        "bp": jnp.zeros((1, FEAT_DIM), jnp.float32),
        "gamma": jnp.ones((1, FEAT_DIM), jnp.float32),
        "beta": jnp.zeros((1, FEAT_DIM), jnp.float32),
        # nn.Linear(768, num_classes): store W^T (768, C) for lane-major matmul
        "head_w_t": jax.random.normal(
            khw, (FEAT_DIM, NUM_CLASSES), jnp.float32) * 0.02,
        "head_b": jax.random.normal(
            khb, (1, NUM_CLASSES), jnp.float32) * 0.01,
    }

    fwd = jax.jit(functools.partial(blip2lp_forward, img_hw=(H, W),
                                    patch=PATCH, num_classes=NUM_CLASSES))
    output, jvp_out = fwd(x, params)
    jax.block_until_ready((output, jvp_out))

    # Pure-JAX f32 reference of the same stub for a sanity check.
    patches_r = _patchify(x.reshape(-1, 3, H, W), PATCH)
    pooled_r = jnp.mean(patches_r, axis=1)
    emb_r = pooled_r @ params["wp"] + params["bp"]
    mu_r = jnp.mean(emb_r, axis=-1, keepdims=True)
    var_r = jnp.mean((emb_r - mu_r) ** 2, axis=-1, keepdims=True)
    feats_r = (emb_r - mu_r) * jax.lax.rsqrt(var_r + LN_EPS)
    feats_r = feats_r * params["gamma"] + params["beta"]
    out_ref = feats_r @ params["head_w_t"] + params["head_b"]

    assert output.shape == (B, NUM_CLASSES)
    assert jvp_out.shape == (B, NUM_CLASSES)
    assert bool(jnp.allclose(output, jvp_out))          # head applied twice
    assert float(jnp.max(jnp.abs(output - out_ref))) < 5e-2  # bf16 tolerance

    print("KERNEL_OK")
</pallas_src>

<mosaic_0001>
module attributes {stable_mosaic.version = 11 : i64} {
  func.func @_blip2lp_kernel(%arg0: i32, %arg1: memref<8x16x256xbf16, #tpu.memory_space<vmem>>, %arg2: memref<256x768xbf16, #tpu.memory_space<vmem>>, %arg3: memref<1x768xf32, #tpu.memory_space<vmem>>, %arg4: memref<1x768xf32, #tpu.memory_space<vmem>>, %arg5: memref<1x768xf32, #tpu.memory_space<vmem>>, %arg6: memref<768x128xbf16, #tpu.memory_space<vmem>>, %arg7: memref<1x128xf32, #tpu.memory_space<vmem>>, %arg8: memref<8x128xf32, #tpu.memory_space<vmem>>) attributes {dimension_semantics = [#tpu.dimension_semantics<parallel>], iteration_bounds = array<i64: 1>, scalar_prefetch = 0 : i64, scratch_operands = 0 : i64, tpu.core_type = #tpu.core_type<tc>, window_params = [{transform_indices = @transform_0, window_bounds = array<i64: 8, 16, 256>}, {pipeline_mode = #tpu.pipeline_mode<synchronous>, transform_indices = @transform_1, window_bounds = array<i64: 256, 768>}, {pipeline_mode = #tpu.pipeline_mode<synchronous>, transform_indices = @transform_2, window_bounds = array<i64: 1, 768>}, {pipeline_mode = #tpu.pipeline_mode<synchronous>, transform_indices = @transform_3, window_bounds = array<i64: 1, 768>}, {pipeline_mode = #tpu.pipeline_mode<synchronous>, transform_indices = @transform_4, window_bounds = array<i64: 1, 768>}, {pipeline_mode = #tpu.pipeline_mode<synchronous>, transform_indices = @transform_5, window_bounds = array<i64: 768, 128>}, {pipeline_mode = #tpu.pipeline_mode<synchronous>, transform_indices = @transform_6, window_bounds = array<i64: 1, 128>}, {transform_indices = @transform_7, window_bounds = array<i64: 8, 128>}]} {
    %c0 = arith.constant 0 : index
    %c0_0 = arith.constant 0 : index
    %c0_1 = arith.constant 0 : index
    %0 = vector.load %arg1[%c0, %c0_0, %c0_1] : memref<8x16x256xbf16, #tpu.memory_space<vmem>>, vector<8x16x256xbf16>
    %1 = arith.extf %0 : vector<8x16x256xbf16> to vector<8x16x256xf32>
    %cst = arith.constant dense<0.000000e+00> : vector<8x256xf32>
    %2 = vector.multi_reduction <add>, %1, %cst [1] : vector<8x16x256xf32> to vector<8x256xf32>
    %cst_2 = arith.constant 1.600000e+01 : f32
    %3 = vector.broadcast %cst_2 : f32 to vector<8x256xf32>
    %4 = arith.divf %2, %3 : vector<8x256xf32>
    %5 = arith.truncf %4 : vector<8x256xf32> to vector<8x256xbf16>
    %c0_3 = arith.constant 0 : index
    %c0_4 = arith.constant 0 : index
    %6 = vector.load %arg2[%c0_3, %c0_4] : memref<256x768xbf16, #tpu.memory_space<vmem>>, vector<256x768xbf16>
    %cst_5 = arith.constant dense<0.000000e+00> : vector<8x768xf32>
    %7 = tpu.matmul %5, %6, %cst_5 {dimension_numbers = #tpu.dot_dimension_numbers<[1], [0], [0], [1], [0, 0, 1, 1], [], []>} : vector<8x256xbf16>, vector<256x768xbf16>, vector<8x768xf32> -> vector<8x768xf32>
    %c0_6 = arith.constant 0 : index
    %c0_7 = arith.constant 0 : index
    %8 = vector.load %arg3[%c0_6, %c0_7] : memref<1x768xf32, #tpu.memory_space<vmem>>, vector<1x768xf32>
    %9 = vector.broadcast %8 : vector<1x768xf32> to vector<8x768xf32>
    %10 = arith.addf %7, %9 : vector<8x768xf32>
    %cst_8 = arith.constant dense<0.000000e+00> : vector<8xf32>
    %11 = vector.multi_reduction <add>, %10, %cst_8 [1] : vector<8x768xf32> to vector<8xf32>
    %12 = vector.shape_cast %11 : vector<8xf32> to vector<8x1xf32>
    %cst_9 = arith.constant 7.680000e+02 : f32
    %13 = vector.broadcast %cst_9 : f32 to vector<8x1xf32>
    %14 = arith.divf %12, %13 : vector<8x1xf32>
    %15 = vector.broadcast %14 : vector<8x1xf32> to vector<8x768xf32>
    %16 = arith.subf %10, %15 : vector<8x768xf32>
    %17 = arith.mulf %16, %16 : vector<8x768xf32>
    %cst_10 = arith.constant dense<0.000000e+00> : vector<8xf32>
    %18 = vector.multi_reduction <add>, %17, %cst_10 [1] : vector<8x768xf32> to vector<8xf32>
    %19 = vector.shape_cast %18 : vector<8xf32> to vector<8x1xf32>
    %cst_11 = arith.constant 7.680000e+02 : f32
    %20 = vector.broadcast %cst_11 : f32 to vector<8x1xf32>
    %21 = arith.divf %19, %20 : vector<8x1xf32>
    %22 = vector.broadcast %14 : vector<8x1xf32> to vector<8x768xf32>
    %23 = arith.subf %10, %22 : vector<8x768xf32>
    %cst_12 = arith.constant 9.99999974E-6 : f32
    %24 = vector.broadcast %cst_12 : f32 to vector<8x1xf32>
    %25 = arith.addf %21, %24 : vector<8x1xf32>
    %26 = math.rsqrt %25 : vector<8x1xf32>
    %27 = vector.broadcast %26 : vector<8x1xf32> to vector<8x768xf32>
    %28 = arith.mulf %23, %27 : vector<8x768xf32>
    %c0_13 = arith.constant 0 : index
    %c0_14 = arith.constant 0 : index
    %29 = vector.load %arg4[%c0_13, %c0_14] : memref<1x768xf32, #tpu.memory_space<vmem>>, vector<1x768xf32>
    %30 = vector.broadcast %29 : vector<1x768xf32> to vector<8x768xf32>
    %31 = arith.mulf %28, %30 : vector<8x768xf32>
    %c0_15 = arith.constant 0 : index
    %c0_16 = arith.constant 0 : index
    %32 = vector.load %arg5[%c0_15, %c0_16] : memref<1x768xf32, #tpu.memory_space<vmem>>, vector<1x768xf32>
    %33 = vector.broadcast %32 : vector<1x768xf32> to vector<8x768xf32>
    %34 = arith.addf %31, %33 : vector<8x768xf32>
    %35 = arith.truncf %34 : vector<8x768xf32> to vector<8x768xbf16>
    %c0_17 = arith.constant 0 : index
    %c0_18 = arith.constant 0 : index
    %36 = vector.load %arg6[%c0_17, %c0_18] : memref<768x128xbf16, #tpu.memory_space<vmem>>, vector<768x128xbf16>
    %cst_19 = arith.constant dense<0.000000e+00> : vector<8x128xf32>
    %37 = tpu.matmul %35, %36, %cst_19 {dimension_numbers = #tpu.dot_dimension_numbers<[1], [0], [0], [1], [0, 0, 1, 1], [], []>} : vector<8x768xbf16>, vector<768x128xbf16>, vector<8x128xf32> -> vector<8x128xf32>
    %c0_20 = arith.constant 0 : index
    %c0_21 = arith.constant 0 : index
    %38 = vector.load %arg7[%c0_20, %c0_21] : memref<1x128xf32, #tpu.memory_space<vmem>>, vector<1x128xf32>
    %39 = vector.broadcast %38 : vector<1x128xf32> to vector<8x128xf32>
    %40 = arith.addf %37, %39 : vector<8x128xf32>
    %c0_22 = arith.constant 0 : index
    %c0_23 = arith.constant 0 : index
    %41 = vector.load %arg8[%c0_22, %c0_23] : memref<8x128xf32, #tpu.memory_space<vmem>>, vector<8x128xf32>
    tpu.vector_store %arg8[%c0_22, %c0_23], %40 {strides = array<i32>} : memref<8x128xf32, #tpu.memory_space<vmem>>, vector<8x128xf32>,
    return
  }
  func.func @transform_0(%arg0: i32) -> (i32, i32, i32) {
    %c0_i32 = arith.constant 0 : i32
    %c0_i32_0 = arith.constant 0 : i32
    %c0_i32_1 = arith.constant 0 : i32
    return %arg0, %c0_i32, %c0_i32_0 : i32, i32, i32
  }
  func.func @transform_1(%arg0: i32) -> (i32, i32) {
    %c0_i32 = arith.constant 0 : i32
    %c0_i32_0 = arith.constant 0 : i32
    %c0_i32_1 = arith.constant 0 : i32
    return %c0_i32, %c0_i32_0 : i32, i32
  }
  func.func @transform_2(%arg0: i32) -> (i32, i32) {
    %c0_i32 = arith.constant 0 : i32
    %c0_i32_0 = arith.constant 0 : i32
    %c0_i32_1 = arith.constant 0 : i32
    return %c0_i32, %c0_i32_0 : i32, i32
  }
  func.func @transform_3(%arg0: i32) -> (i32, i32) {
    %c0_i32 = arith.constant 0 : i32
    %c0_i32_0 = arith.constant 0 : i32
    %c0_i32_1 = arith.constant 0 : i32
    return %c0_i32, %c0_i32_0 : i32, i32
  }
  func.func @transform_4(%arg0: i32) -> (i32, i32) {
    %c0_i32 = arith.constant 0 : i32
    %c0_i32_0 = arith.constant 0 : i32
    %c0_i32_1 = arith.constant 0 : i32
    return %c0_i32, %c0_i32_0 : i32, i32
  }
  func.func @transform_5(%arg0: i32) -> (i32, i32) {
    %c0_i32 = arith.constant 0 : i32
    %c0_i32_0 = arith.constant 0 : i32
    %c0_i32_1 = arith.constant 0 : i32
    return %c0_i32, %c0_i32_0 : i32, i32
  }
  func.func @transform_6(%arg0: i32) -> (i32, i32) {
    %c0_i32 = arith.constant 0 : i32
    %c0_i32_0 = arith.constant 0 : i32
    %c0_i32_1 = arith.constant 0 : i32
    return %c0_i32, %c0_i32_0 : i32, i32
  }
  func.func @transform_7(%arg0: i32) -> (i32, i32) {
    %c0_i32 = arith.constant 0 : i32
    %c0_i32_0 = arith.constant 0 : i32
    return %arg0, %c0_i32 : i32, i32
  }
}

</mosaic_0001>

<llo_original>
// kernel: blip2lp_forward.1
$region0: #{blip2lp_forward.1}
  #allocation0 [shape = 'u32[]', space=smem, size = 0x4, offset = 0x4, fixed_abs, tag = 'smem constant byte address 0x4 - core index']
  #allocation1 [shape = 'u32[144,128]{1,0:T(1,128)}', space=vmem, size = 0x12000, scoped, tag = 'internal scratch']
  %s0 = inlined_call_operand.vmem [shape: bf16[8,16,256], index: 0, kind: input, shape index: {}]
  %s1 = inlined_call_operand.vmem [shape: bf16[256,768], index: 1, kind: input, shape index: {}]
  %s2 = inlined_call_operand.vmem [shape: f32[1,768], index: 2, kind: input, shape index: {}]
  %s3 = inlined_call_operand.vmem [shape: f32[1,768], index: 3, kind: input, shape index: {}]
  %s4 = inlined_call_operand.vmem [shape: f32[1,768], index: 4, kind: input, shape index: {}]
  %s5 = inlined_call_operand.vmem [shape: bf16[768,128], index: 5, kind: input, shape index: {}]
  %s6 = inlined_call_operand.vmem [shape: f32[1,128], index: 6, kind: input, shape index: {}]
  %s7 = inlined_call_operand.vmem [shape: f32[8,128], index: 7, kind: output, shape index: {}]
  %s8 = sld [smem:[#allocation0]]
  $region38: #{blip2lp_forward.1} parent=0
    _
  %s10 = ssub.s32 1, %s8
  %s11 = scalar_select 0, %s10, %s8
  // Predicated region
  $region2: #{blip2lp_forward.1} parent=0 // pred_check
    _
  $region3: #{blip2lp_forward.1} parent=0 // pred_check_branch
    %13 = sbr.rel (0) target = $region5
  $region4: #{blip2lp_forward.1} parent=0 // pred_region
    _
  $region5: #{blip2lp_forward.1} parent=0 // pred_fallthru
    _
  // Predicated region
  $region6: #{blip2lp_forward.1} parent=0 // pred_check
    _
  $region7: #{blip2lp_forward.1} parent=0 // pred_check_branch
    %15 = sbr.rel (0) target = $region9
  $region8: #{blip2lp_forward.1} parent=0 // pred_region
    _
  $region9: #{blip2lp_forward.1} parent=0 // pred_fallthru
    _
  // Predicated region
  $region10: #{blip2lp_forward.1} parent=0 // pred_check
    _
  $region11: #{blip2lp_forward.1} parent=0 // pred_check_branch
    %17 = sbr.rel (0) target = $region13
  $region12: #{blip2lp_forward.1} parent=0 // pred_region
    _
  $region13: #{blip2lp_forward.1} parent=0 // pred_fallthru
    _
  // Predicated region
  $region14: #{blip2lp_forward.1} parent=0 // pred_check
    _
  $region15: #{blip2lp_forward.1} parent=0 // pred_check_branch
    %19 = sbr.rel (0) target = $region17
  $region16: #{blip2lp_forward.1} parent=0 // pred_region
    _
  $region17: #{blip2lp_forward.1} parent=0 // pred_fallthru
    _
  // Predicated region
  $region18: #{blip2lp_forward.1} parent=0 // pred_check
    _
  $region19: #{blip2lp_forward.1} parent=0 // pred_check_branch
    %21 = sbr.rel (0) target = $region21
  $region20: #{blip2lp_forward.1} parent=0 // pred_region
    _
  $region21: #{blip2lp_forward.1} parent=0 // pred_fallthru
    _
  // Predicated region
  $region22: #{blip2lp_forward.1} parent=0 // pred_check
    _
  $region23: #{blip2lp_forward.1} parent=0 // pred_check_branch
    %23 = sbr.rel (0) target = $region25
  $region24: #{blip2lp_forward.1} parent=0 // pred_region
    _
  $region25: #{blip2lp_forward.1} parent=0 // pred_fallthru
    _
  // Predicated region
  $region26: #{blip2lp_forward.1} parent=0 // pred_check
    _
  $region27: #{blip2lp_forward.1} parent=0 // pred_check_branch
    %25 = sbr.rel (0) target = $region29
  $region28: #{blip2lp_forward.1} parent=0 // pred_region
    _
  $region29: #{blip2lp_forward.1} parent=0 // pred_fallthru
    _
  %v27 = vld [vmem:[%s0] sm:$0xff]
  %v28 = vld [vmem:[%s0 + $0x8] sm:$0xff]
  %v29 = vld [vmem:[%s0 + $0x10] sm:$0xff]
  %v30 = vld [vmem:[%s0 + $0x18] sm:$0xff]
  %v31 = vld [vmem:[%s0 + $0x20] sm:$0xff]
  %v32 = vld [vmem:[%s0 + $0x28] sm:$0xff]
  %v33 = vld [vmem:[%s0 + $0x30] sm:$0xff]
  %v34 = vld [vmem:[%s0 + $0x38] sm:$0xff]
  %v35 = vld [vmem:[%s0 + $0x40] sm:$0xff]
  %v36 = vld [vmem:[%s0 + $0x48] sm:$0xff]
  %v37 = vld [vmem:[%s0 + $0x50] sm:$0xff]
  %v38 = vld [vmem:[%s0 + $0x58] sm:$0xff]
  %v39 = vld [vmem:[%s0 + $0x60] sm:$0xff]
  %v40 = vld [vmem:[%s0 + $0x68] sm:$0xff]
  %v41 = vld [vmem:[%s0 + $0x70] sm:$0xff]
  %v42 = vld [vmem:[%s0 + $0x78] sm:$0xff]
  %v43 = vunpack.c.l.bf16 %v27
  %v44 = vunpack.c.h.bf16 %v27
  %v45 = vunpack.c.l.bf16 %v28
  %v46 = vunpack.c.h.bf16 %v28
  %v47 = vunpack.c.l.bf16 %v29
  %v48 = vunpack.c.h.bf16 %v29
  %v49 = vunpack.c.l.bf16 %v30
  %v50 = vunpack.c.h.bf16 %v30
  %v51 = vunpack.c.l.bf16 %v31
  %v52 = vunpack.c.h.bf16 %v31
  %v53 = vunpack.c.l.bf16 %v32
  %v54 = vunpack.c.h.bf16 %v32
  %v55 = vunpack.c.l.bf16 %v33
  %v56 = vunpack.c.h.bf16 %v33
  %v57 = vunpack.c.l.bf16 %v34
  %v58 = vunpack.c.h.bf16 %v34
  %v59 = vunpack.c.l.bf16 %v35
  %v60 = vunpack.c.h.bf16 %v35
  %v61 = vunpack.c.l.bf16 %v36
  %v62 = vunpack.c.h.bf16 %v36
  %v63 = vunpack.c.l.bf16 %v37
  %v64 = vunpack.c.h.bf16 %v37
  %v65 = vunpack.c.l.bf16 %v38
  %v66 = vunpack.c.h.bf16 %v38
  %v67 = vunpack.c.l.bf16 %v39
  %v68 = vunpack.c.h.bf16 %v39
  %v69 = vunpack.c.l.bf16 %v40
  %v70 = vunpack.c.h.bf16 %v40
  %v71 = vunpack.c.l.bf16 %v41
  %v72 = vunpack.c.h.bf16 %v41
  %v73 = vunpack.c.l.bf16 %v42
  %v74 = vunpack.c.h.bf16 %v42
  %v75 = vadd.f32 %v43, %v45
  %v76 = vrot.slane %v75, 4
  %v77 = vadd.f32 %v75, %v76
  %v78 = vrot.slane %v77, 2
  %v79 = vadd.f32 %v77, %v78
  %v80 = vrot.slane %v79, 1
  %v81 = vadd.f32 %v79, %v80
  %v82 = vadd.f32 %v44, %v46
  %v83 = vrot.slane %v82, 4
  %v84 = vadd.f32 %v82, %v83
  %v85 = vrot.slane %v84, 2
  %v86 = vadd.f32 %v84, %v85
  %v87 = vrot.slane %v86, 1
  %v88 = vadd.f32 %v86, %v87
  %v89 = vadd.f32 %v47, %v49
  %v90 = vrot.slane %v89, 4
  %v91 = vadd.f32 %v89, %v90
  %v92 = vrot.slane %v91, 2
  %v93 = vadd.f32 %v91, %v92
  %v94 = vrot.slane %v93, 1
  %v95 = vadd.f32 %v93, %v94
  %v96 = vadd.f32 %v48, %v50
  %v97 = vrot.slane %v96, 4
  %v98 = vadd.f32 %v96, %v97
  %v99 = vrot.slane %v98, 2
  %v100 = vadd.f32 %v98, %v99
  %v101 = vrot.slane %v100, 1
  %v102 = vadd.f32 %v100, %v101
  %v103 = vadd.f32 %v51, %v53
  %v104 = vrot.slane %v103, 4
  %v105 = vadd.f32 %v103, %v104
  %v106 = vrot.slane %v105, 2
  %v107 = vadd.f32 %v105, %v106
  %v108 = vrot.slane %v107, 1
  %v109 = vadd.f32 %v107, %v108
  %v110 = vadd.f32 %v52, %v54
  %v111 = vrot.slane %v110, 4
  %v112 = vadd.f32 %v110, %v111
  %v113 = vrot.slane %v112, 2
  %v114 = vadd.f32 %v112, %v113
  %v115 = vrot.slane %v114, 1
  %v116 = vadd.f32 %v114, %v115
  %v117 = vadd.f32 %v55, %v57
  %v118 = vrot.slane %v117, 4
  %v119 = vadd.f32 %v117, %v118
  %v120 = vrot.slane %v119, 2
  %v121 = vadd.f32 %v119, %v120
  %v122 = vrot.slane %v121, 1
  %v123 = vadd.f32 %v121, %v122
  %v124 = vadd.f32 %v56, %v58
  %v125 = vrot.slane %v124, 4
  %v126 = vadd.f32 %v124, %v125
  %v127 = vrot.slane %v126, 2
  %v128 = vadd.f32 %v126, %v127
  %v129 = vrot.slane %v128, 1
  %v130 = vadd.f32 %v128, %v129
  %v131 = vadd.f32 %v59, %v61
  %v132 = vrot.slane %v131, 4
  %v133 = vadd.f32 %v131, %v132
  %v134 = vrot.slane %v133, 2
  %v135 = vadd.f32 %v133, %v134
  %v136 = vrot.slane %v135, 1
  %v137 = vadd.f32 %v135, %v136
  %v138 = vadd.f32 %v60, %v62
  %v139 = vrot.slane %v138, 4
  %v140 = vadd.f32 %v138, %v139
  %v141 = vrot.slane %v140, 2
  %v142 = vadd.f32 %v140, %v141
  %v143 = vrot.slane %v142, 1
  %v144 = vadd.f32 %v142, %v143
  %v145 = vadd.f32 %v63, %v65
  %v146 = vrot.slane %v145, 4
  %v147 = vadd.f32 %v145, %v146
  %v148 = vrot.slane %v147, 2
  %v149 = vadd.f32 %v147, %v148
  %v150 = vrot.slane %v149, 1
  %v151 = vadd.f32 %v149, %v150
  %v152 = vadd.f32 %v64, %v66
  %v153 = vrot.slane %v152, 4
  %v154 = vadd.f32 %v152, %v153
  %v155 = vrot.slane %v154, 2
  %v156 = vadd.f32 %v154, %v155
  %v157 = vrot.slane %v156, 1
  %v158 = vadd.f32 %v156, %v157
  %v159 = vadd.f32 %v67, %v69
  %v160 = vrot.slane %v159, 4
  %v161 = vadd.f32 %v159, %v160
  %v162 = vrot.slane %v161, 2
  %v163 = vadd.f32 %v161, %v162
  %v164 = vrot.slane %v163, 1
  %v165 = vadd.f32 %v163, %v164
  %v166 = vadd.f32 %v68, %v70
  %v167 = vrot.slane %v166, 4
  %v168 = vadd.f32 %v166, %v167
  %v169 = vrot.slane %v168, 2
  %v170 = vadd.f32 %v168, %v169
  %v171 = vrot.slane %v170, 1
  %v172 = vadd.f32 %v170, %v171
  %v173 = vadd.f32 %v71, %v73
  %v174 = vrot.slane %v173, 4
  %v175 = vadd.f32 %v173, %v174
  %v176 = vrot.slane %v175, 2
  %v177 = vadd.f32 %v175, %v176
  %v178 = vrot.slane %v177, 1
  %v179 = vadd.f32 %v177, %v178
  %v180 = vadd.f32 %v72, %v74
  %v181 = vrot.slane %v180, 4
  %v182 = vadd.f32 %v180, %v181
  %v183 = vrot.slane %v182, 2
  %v184 = vadd.f32 %v182, %v183
  %v185 = vrot.slane %v184, 1
  %v186 = vadd.f32 %v184, %v185
  %v187 = vrcp.pop 16.0
  %v188 = vmul.f32 %v81, %v187
  %v189 = vmul.f32 %v88, %v187
  %v190 = vmul.f32 %v95, %v187
  %v191 = vmul.f32 %v102, %v187
  %v192 = vmul.f32 %v109, %v187
  %v193 = vmul.f32 %v116, %v187
  %v194 = vmul.f32 %v123, %v187
  %v195 = vmul.f32 %v130, %v187
  %v196 = vmul.f32 %v137, %v187
  %v197 = vmul.f32 %v144, %v187
  %v198 = vmul.f32 %v151, %v187
  %v199 = vmul.f32 %v158, %v187
  %v200 = vmul.f32 %v165, %v187
  %v201 = vmul.f32 %v172, %v187
  %v202 = vmul.f32 %v179, %v187
  %v203 = vmul.f32 %v186, %v187
  %v204 = vpack.c.bf16 %v188, %v188
  %v205 = vpack.c.bf16 %v189, %v189
  %v206 = vpack.c.bf16 %v190, %v190
  %v207 = vpack.c.bf16 %v191, %v191
  %v208 = vpack.c.bf16 %v192, %v192
  %v209 = vpack.c.bf16 %v193, %v193
  %v210 = vpack.c.bf16 %v194, %v194
  %v211 = vpack.c.bf16 %v195, %v195
  %v212 = vpack.c.bf16 %v196, %v196
  %v213 = vpack.c.bf16 %v197, %v197
  %v214 = vpack.c.bf16 %v198, %v198
  %v215 = vpack.c.bf16 %v199, %v199
  %v216 = vpack.c.bf16 %v200, %v200
  %v217 = vpack.c.bf16 %v201, %v201
  %v218 = vpack.c.bf16 %v202, %v202
  %v219 = vpack.c.bf16 %v203, %v203
  %v220 = vld [vmem:[%s1] sm:$0xff]
  %v221 = vld [vmem:[%s1 + $0x8] sm:$0xff]
  %v222 = vld [vmem:[%s1 + $0x10] sm:$0xff]
  %v223 = vld [vmem:[%s1 + $0x18] sm:$0xff]
  %v224 = vld [vmem:[%s1 + $0x20] sm:$0xff]
  %v225 = vld [vmem:[%s1 + $0x28] sm:$0xff]
  %v226 = vld [vmem:[%s1 + $0x30] sm:$0xff]
  %v227 = vld [vmem:[%s1 + $0x38] sm:$0xff]
  %v228 = vld [vmem:[%s1 + $0x40] sm:$0xff]
  %v229 = vld [vmem:[%s1 + $0x48] sm:$0xff]
  %v230 = vld [vmem:[%s1 + $0x50] sm:$0xff]
  %v231 = vld [vmem:[%s1 + $0x58] sm:$0xff]
  %v232 = vld [vmem:[%s1 + $0x60] sm:$0xff]
  %v233 = vld [vmem:[%s1 + $0x68] sm:$0xff]
  %v234 = vld [vmem:[%s1 + $0x70] sm:$0xff]
  %v235 = vld [vmem:[%s1 + $0x78] sm:$0xff]
  %v236 = vld [vmem:[%s1 + $0x80] sm:$0xff]
  %v237 = vld [vmem:[%s1 + $0x88] sm:$0xff]
  %v238 = vld [vmem:[%s1 + $0x90] sm:$0xff]
  %v239 = vld [vmem:[%s1 + $0x98] sm:$0xff]
  %v240 = vld [vmem:[%s1 + $0xa0] sm:$0xff]
  %v241 = vld [vmem:[%s1 + $0xa8] sm:$0xff]
  %v242 = vld [vmem:[%s1 + $0xb0] sm:$0xff]
  %v243 = vld [vmem:[%s1 + $0xb8] sm:$0xff]
  %v244 = vld [vmem:[%s1 + $0xc0] sm:$0xff]
  %v245 = vld [vmem:[%s1 + $0xc8] sm:$0xff]
  %v246 = vld [vmem:[%s1 + $0xd0] sm:$0xff]
  %v247 = vld [vmem:[%s1 + $0xd8] sm:$0xff]
  %v248 = vld [vmem:[%s1 + $0xe0] sm:$0xff]
  %v249 = vld [vmem:[%s1 + $0xe8] sm:$0xff]
  %v250 = vld [vmem:[%s1 + $0xf0] sm:$0xff]
  %v251 = vld [vmem:[%s1 + $0xf8] sm:$0xff]
  %v252 = vld [vmem:[%s1 + $0x100] sm:$0xff]
  %v253 = vld [vmem:[%s1 + $0x108] sm:$0xff]
  %v254 = vld [vmem:[%s1 + $0x110] sm:$0xff]
  %v255 = vld [vmem:[%s1 + $0x118] sm:$0xff]
  %v256 = vld [vmem:[%s1 + $0x120] sm:$0xff]
  %v257 = vld [vmem:[%s1 + $0x128] sm:$0xff]
  %v258 = vld [vmem:[%s1 + $0x130] sm:$0xff]
  %v259 = vld [vmem:[%s1 + $0x138] sm:$0xff]
  %v260 = vld [vmem:[%s1 + $0x140] sm:$0xff]
  %v261 = vld [vmem:[%s1 + $0x148] sm:$0xff]
  %v262 = vld [vmem:[%s1 + $0x150] sm:$0xff]
  %v263 = vld [vmem:[%s1 + $0x158] sm:$0xff]
  %v264 = vld [vmem:[%s1 + $0x160] sm:$0xff]
  %v265 = vld [vmem:[%s1 + $0x168] sm:$0xff]
  %v266 = vld [vmem:[%s1 + $0x170] sm:$0xff]
  %v267 = vld [vmem:[%s1 + $0x178] sm:$0xff]
  %v268 = vld [vmem:[%s1 + $0x180] sm:$0xff]
  %v269 = vld [vmem:[%s1 + $0x188] sm:$0xff]
  %v270 = vld [vmem:[%s1 + $0x190] sm:$0xff]
  %v271 = vld [vmem:[%s1 + $0x198] sm:$0xff]
  %v272 = vld [vmem:[%s1 + $0x1a0] sm:$0xff]
  %v273 = vld [vmem:[%s1 + $0x1a8] sm:$0xff]
  %v274 = vld [vmem:[%s1 + $0x1b0] sm:$0xff]
  %v275 = vld [vmem:[%s1 + $0x1b8] sm:$0xff]
  %v276 = vld [vmem:[%s1 + $0x1c0] sm:$0xff]
  %v277 = vld [vmem:[%s1 + $0x1c8] sm:$0xff]
  %v278 = vld [vmem:[%s1 + $0x1d0] sm:$0xff]
  %v279 = vld [vmem:[%s1 + $0x1d8] sm:$0xff]
  %v280 = vld [vmem:[%s1 + $0x1e0] sm:$0xff]
  %v281 = vld [vmem:[%s1 + $0x1e8] sm:$0xff]
  %v282 = vld [vmem:[%s1 + $0x1f0] sm:$0xff]
  %v283 = vld [vmem:[%s1 + $0x1f8] sm:$0xff]
  %v284 = vld [vmem:[%s1 + $0x200] sm:$0xff]
  %v285 = vld [vmem:[%s1 + $0x208] sm:$0xff]
  %v286 = vld [vmem:[%s1 + $0x210] sm:$0xff]
  %v287 = vld [vmem:[%s1 + $0x218] sm:$0xff]
  %v288 = vld [vmem:[%s1 + $0x220] sm:$0xff]
  %v289 = vld [vmem:[%s1 + $0x228] sm:$0xff]
  %v290 = vld [vmem:[%s1 + $0x230] sm:$0xff]
  %v291 = vld [vmem:[%s1 + $0x238] sm:$0xff]
  %v292 = vld [vmem:[%s1 + $0x240] sm:$0xff]
  %v293 = vld [vmem:[%s1 + $0x248] sm:$0xff]
  %v294 = vld [vmem:[%s1 + $0x250] sm:$0xff]
  %v295 = vld [vmem:[%s1 + $0x258] sm:$0xff]
  %v296 = vld [vmem:[%s1 + $0x260] sm:$0xff]
  %v297 = vld [vmem:[%s1 + $0x268] sm:$0xff]
  %v298 = vld [vmem:[%s1 + $0x270] sm:$0xff]
  %v299 = vld [vmem:[%s1 + $0x278] sm:$0xff]
  %v300 = vld [vmem:[%s1 + $0x280] sm:$0xff]
  %v301 = vld [vmem:[%s1 + $0x288] sm:$0xff]
  %v302 = vld [vmem:[%s1 + $0x290] sm:$0xff]
  %v303 = vld [vmem:[%s1 + $0x298] sm:$0xff]
  %v304 = vld [vmem:[%s1 + $0x2a0] sm:$0xff]
  %v305 = vld [vmem:[%s1 + $0x2a8] sm:$0xff]
  %v306 = vld [vmem:[%s1 + $0x2b0] sm:$0xff]
  %v307 = vld [vmem:[%s1 + $0x2b8] sm:$0xff]
  %v308 = vld [vmem:[%s1 + $0x2c0] sm:$0xff]
  %v309 = vld [vmem:[%s1 + $0x2c8] sm:$0xff]
  %v310 = vld [vmem:[%s1 + $0x2d0] sm:$0xff]
  %v311 = vld [vmem:[%s1 + $0x2d8] sm:$0xff]
  %v312 = vld [vmem:[%s1 + $0x2e0] sm:$0xff]
  %v313 = vld [vmem:[%s1 + $0x2e8] sm:$0xff]
  %v314 = vld [vmem:[%s1 + $0x2f0] sm:$0xff]
  %v315 = vld [vmem:[%s1 + $0x2f8] sm:$0xff]
  %v316 = vld [vmem:[%s2] sm:$0x3f]
  %v318 = vlaneseq
  %v319 = vshrl.u32 %v318, 7
  %v320 = vsub.s32 0, %v319
  %v321 = vrot.slane %v316, %v320
  %v322 = vlaneseq
  %v323 = vshrl.u32 %v322, 7
  %v324 = vsub.s32 1, %v323
  %v325 = vrot.slane %v316, %v324
  %v326 = vlaneseq
  %v327 = vshrl.u32 %v326, 7
  %v328 = vsub.s32 2, %v327
  %v329 = vrot.slane %v316, %v328
  %v330 = vlaneseq
  %v331 = vshrl.u32 %v330, 7
  %v332 = vsub.s32 3, %v331
  %v333 = vrot.slane %v316, %v332
  %v334 = vlaneseq
  %v335 = vshrl.u32 %v334, 7
  %v336 = vsub.s32 4, %v335
  %v337 = vrot.slane %v316, %v336
  %v338 = vlaneseq
  %v339 = vshrl.u32 %v338, 7
  %v340 = vsub.s32 5, %v339
  %v341 = vrot.slane %v316, %v340
  %v364 = vunpack.c.l.b16 %v204
  %v365 = vunpack.c.l.b16 %v205
  %v366 = vunpack.c.l.b16 %v206
  %v367 = vunpack.c.l.b16 %v207
  %v368 = vunpack.c.l.b16 %v208
  %v369 = vunpack.c.l.b16 %v209
  %v370 = vunpack.c.l.b16 %v210
  %v371 = vunpack.c.l.b16 %v211
  %v372 = vunpack.c.l.b16 %v212
  %v373 = vunpack.c.l.b16 %v213
  %v374 = vunpack.c.l.b16 %v214
  %v375 = vunpack.c.l.b16 %v215
  %v376 = vunpack.c.l.b16 %v216
  %v377 = vunpack.c.l.b16 %v217
  %v378 = vunpack.c.l.b16 %v218
  %v379 = vunpack.c.l.b16 %v219
  %vm380 = vcmask 1041409
  %v381 = vsel %vm380, %v366, %v364
  %vm382 = vcmask 1042434
  %v383 = vsel %vm382, %v368, %v381
  %vm384 = vcmask 1043459
  %v385 = vsel %vm384, %v370, %v383
  %vm386 = vcmask 1044484
  %v387 = vsel %vm386, %v372, %v385
  %vm388 = vcmask 1045509
  %v389 = vsel %vm388, %v374, %v387
  %vm390 = vcmask 1046534
  %v391 = vsel %vm390, %v376, %v389
  %vm392 = vcmask 1047559
  %v393 = vsel %vm392, %v378, %v391
  %v394 = vsel %vm380, %v367, %v365
  %v395 = vsel %vm382, %v369, %v394
  %v396 = vsel %vm384, %v371, %v395
  %v397 = vsel %vm386, %v373, %v396
  %v398 = vsel %vm388, %v375, %v397
  %v399 = vsel %vm390, %v377, %v398
  %v400 = vsel %vm392, %v379, %v399
  %v401 = vpack.c.b16 %v393, %v393
  %v402 = vpack.c.b16 %v400, %v400
  %v501 = vunpack.c.l.b16 %v220
  %v502 = vunpack.c.h.b16 %v220
  %v503 = vunpack.c.l.b16 %v221
  %v504 = vunpack.c.h.b16 %v221
  %v505 = vunpack.c.l.b16 %v222
  %v506 = vunpack.c.h.b16 %v222
  %v507 = vunpack.c.l.b16 %v223
  %v508 = vunpack.c.h.b16 %v223
  %v509 = vunpack.c.l.b16 %v224
  %v510 = vunpack.c.h.b16 %v224
  %v511 = vunpack.c.l.b16 %v225
  %v512 = vunpack.c.h.b16 %v225
  %v513 = vunpack.c.l.b16 %v226
  %v514 = vunpack.c.h.b16 %v226
  %v515 = vunpack.c.l.b16 %v227
  %v516 = vunpack.c.h.b16 %v227
  %v517 = vunpack.c.l.b16 %v228
  %v518 = vunpack.c.h.b16 %v228
  %v519 = vunpack.c.l.b16 %v229
  %v520 = vunpack.c.h.b16 %v229
  %v521 = vunpack.c.l.b16 %v230
  %v522 = vunpack.c.h.b16 %v230
  %v523 = vunpack.c.l.b16 %v231
  %v524 = vunpack.c.h.b16 %v231
  %v525 = vunpack.c.l.b16 %v232
  %v526 = vunpack.c.h.b16 %v232
  %v527 = vunpack.c.l.b16 %v233
  %v528 = vunpack.c.h.b16 %v233
  %v529 = vunpack.c.l.b16 %v234
  %v530 = vunpack.c.h.b16 %v234
  %v531 = vunpack.c.l.b16 %v235
  %v532 = vunpack.c.h.b16 %v235
  %v533 = vunpack.c.l.b16 %v236
  %v534 = vunpack.c.h.b16 %v236
  %v535 = vunpack.c.l.b16 %v237
  %v536 = vunpack.c.h.b16 %v237
  %v537 = vunpack.c.l.b16 %v238
  %v538 = vunpack.c.h.b16 %v238
  %v539 = vunpack.c.l.b16 %v239
  %v540 = vunpack.c.h.b16 %v239
  %v541 = vunpack.c.l.b16 %v240
  %v542 = vunpack.c.h.b16 %v240
  %v543 = vunpack.c.l.b16 %v241
  %v544 = vunpack.c.h.b16 %v241
  %v545 = vunpack.c.l.b16 %v242
  %v546 = vunpack.c.h.b16 %v242
  %v547 = vunpack.c.l.b16 %v243
  %v548 = vunpack.c.h.b16 %v243
  %v549 = vunpack.c.l.b16 %v244
  %v550 = vunpack.c.h.b16 %v244
  %v551 = vunpack.c.l.b16 %v245
  %v552 = vunpack.c.h.b16 %v245
  %v553 = vunpack.c.l.b16 %v246
  %v554 = vunpack.c.h.b16 %v246
  %v555 = vunpack.c.l.b16 %v247
  %v556 = vunpack.c.h.b16 %v247
  %v557 = vunpack.c.l.b16 %v248
  %v558 = vunpack.c.h.b16 %v248
  %v559 = vunpack.c.l.b16 %v249
  %v560 = vunpack.c.h.b16 %v249
  %v561 = vunpack.c.l.b16 %v250
  %v562 = vunpack.c.h.b16 %v250
  %v563 = vunpack.c.l.b16 %v251
  %v564 = vunpack.c.h.b16 %v251
  %v565 = vunpack.c.l.b16 %v252
  %v566 = vunpack.c.h.b16 %v252
  %v567 = vunpack.c.l.b16 %v253
  %v568 = vunpack.c.h.b16 %v253
  %v569 = vunpack.c.l.b16 %v254
  %v570 = vunpack.c.h.b16 %v254
  %v571 = vunpack.c.l.b16 %v255
  %v572 = vunpack.c.h.b16 %v255
  %v573 = vunpack.c.l.b16 %v256
  %v574 = vunpack.c.h.b16 %v256
  %v575 = vunpack.c.l.b16 %v257
  %v576 = vunpack.c.h.b16 %v257
  %v577 = vunpack.c.l.b16 %v258
  %v578 = vunpack.c.h.b16 %v258
  %v579 = vunpack.c.l.b16 %v259
  %v580 = vunpack.c.h.b16 %v259
  %v581 = vunpack.c.l.b16 %v260
  %v582 = vunpack.c.h.b16 %v260
  %v583 = vunpack.c.l.b16 %v261
  %v584 = vunpack.c.h.b16 %v261
  %v585 = vunpack.c.l.b16 %v262
  %v586 = vunpack.c.h.b16 %v262
  %v587 = vunpack.c.l.b16 %v263
  %v588 = vunpack.c.h.b16 %v263
  %v589 = vunpack.c.l.b16 %v264
  %v590 = vunpack.c.h.b16 %v264
  %v591 = vunpack.c.l.b16 %v265
  %v592 = vunpack.c.h.b16 %v265
  %v593 = vunpack.c.l.b16 %v266
  %v594 = vunpack.c.h.b16 %v266
  %v595 = vunpack.c.l.b16 %v267
  %v596 = vunpack.c.h.b16 %v267
  %v597 = vunpack.c.l.b16 %v268
  %v598 = vunpack.c.h.b16 %v268
  %v599 = vunpack.c.l.b16 %v269
  %v600 = vunpack.c.h.b16 %v269
  %v601 = vunpack.c.l.b16 %v270
  %v602 = vunpack.c.h.b16 %v270
  %v603 = vunpack.c.l.b16 %v271
  %v604 = vunpack.c.h.b16 %v271
  %v605 = vunpack.c.l.b16 %v272
  %v606 = vunpack.c.h.b16 %v272
  %v607 = vunpack.c.l.b16 %v273
  %v608 = vunpack.c.h.b16 %v273
  %v609 = vunpack.c.l.b16 %v274
  %v610 = vunpack.c.h.b16 %v274
  %v611 = vunpack.c.l.b16 %v275
  %v612 = vunpack.c.h.b16 %v275
  %v613 = vunpack.c.l.b16 %v276
  %v614 = vunpack.c.h.b16 %v276
  %v615 = vunpack.c.l.b16 %v277
  %v616 = vunpack.c.h.b16 %v277
  %v617 = vunpack.c.l.b16 %v278
  %v618 = vunpack.c.h.b16 %v278
  %v619 = vunpack.c.l.b16 %v279
  %v620 = vunpack.c.h.b16 %v279
  %v621 = vunpack.c.l.b16 %v280
  %v622 = vunpack.c.h.b16 %v280
  %v623 = vunpack.c.l.b16 %v281
  %v624 = vunpack.c.h.b16 %v281
  %v625 = vunpack.c.l.b16 %v282
  %v626 = vunpack.c.h.b16 %v282
  %v627 = vunpack.c.l.b16 %v283
  %v628 = vunpack.c.h.b16 %v283
  %v629 = vunpack.c.l.b16 %v284
  %v630 = vunpack.c.h.b16 %v284
  %v631 = vunpack.c.l.b16 %v285
  %v632 = vunpack.c.h.b16 %v285
  %v633 = vunpack.c.l.b16 %v286
  %v634 = vunpack.c.h.b16 %v286
  %v635 = vunpack.c.l.b16 %v287
  %v636 = vunpack.c.h.b16 %v287
  %v637 = vunpack.c.l.b16 %v288
  %v638 = vunpack.c.h.b16 %v288
  %v639 = vunpack.c.l.b16 %v289
  %v640 = vunpack.c.h.b16 %v289
  %v641 = vunpack.c.l.b16 %v290
  %v642 = vunpack.c.h.b16 %v290
  %v643 = vunpack.c.l.b16 %v291
  %v644 = vunpack.c.h.b16 %v291
  %v645 = vunpack.c.l.b16 %v292
  %v646 = vunpack.c.h.b16 %v292
  %v647 = vunpack.c.l.b16 %v293
  %v648 = vunpack.c.h.b16 %v293
  %v649 = vunpack.c.l.b16 %v294
  %v650 = vunpack.c.h.b16 %v294
  %v651 = vunpack.c.l.b16 %v295
  %v652 = vunpack.c.h.b16 %v295
  %v653 = vunpack.c.l.b16 %v296
  %v654 = vunpack.c.h.b16 %v296
  %v655 = vunpack.c.l.b16 %v297
  %v656 = vunpack.c.h.b16 %v297
  %v657 = vunpack.c.l.b16 %v298
  %v658 = vunpack.c.h.b16 %v298
  %v659 = vunpack.c.l.b16 %v299
  %v660 = vunpack.c.h.b16 %v299
  %v661 = vunpack.c.l.b16 %v300
  %v662 = vunpack.c.h.b16 %v300
  %v663 = vunpack.c.l.b16 %v301
  %v664 = vunpack.c.h.b16 %v301
  %v665 = vunpack.c.l.b16 %v302
  %v666 = vunpack.c.h.b16 %v302
  %v667 = vunpack.c.l.b16 %v303
  %v668 = vunpack.c.h.b16 %v303
  %v669 = vunpack.c.l.b16 %v304
  %v670 = vunpack.c.h.b16 %v304
  %v671 = vunpack.c.l.b16 %v305
  %v672 = vunpack.c.h.b16 %v305
  %v673 = vunpack.c.l.b16 %v306
  %v674 = vunpack.c.h.b16 %v306
  %v675 = vunpack.c.l.b16 %v307
  %v676 = vunpack.c.h.b16 %v307
  %v677 = vunpack.c.l.b16 %v308
  %v678 = vunpack.c.h.b16 %v308
  %v679 = vunpack.c.l.b16 %v309
  %v680 = vunpack.c.h.b16 %v309
  %v681 = vunpack.c.l.b16 %v310
  %v682 = vunpack.c.h.b16 %v310
  %v683 = vunpack.c.l.b16 %v311
  %v684 = vunpack.c.h.b16 %v311
  %v685 = vunpack.c.l.b16 %v312
  %v686 = vunpack.c.h.b16 %v312
  %v687 = vunpack.c.l.b16 %v313
  %v688 = vunpack.c.h.b16 %v313
  %v689 = vunpack.c.l.b16 %v314
  %v690 = vunpack.c.h.b16 %v314
  %v691 = vunpack.c.l.b16 %v315
  %v692 = vunpack.c.h.b16 %v315
  %v693 = vpack.c.b16 %v507, %v501
  %v694 = vpack.c.b16 %v508, %v502
  %v695 = vpack.c.b16 %v509, %v503
  %v696 = vpack.c.b16 %v510, %v504
  %v697 = vpack.c.b16 %v511, %v505
  %v698 = vpack.c.b16 %v512, %v506
  %v699 = vpack.c.b16 %v519, %v513
  %v700 = vpack.c.b16 %v520, %v514
  %v701 = vpack.c.b16 %v521, %v515
  %v702 = vpack.c.b16 %v522, %v516
  %v703 = vpack.c.b16 %v523, %v517
  %v704 = vpack.c.b16 %v524, %v518
  %v705 = vpack.c.b16 %v531, %v525
  %v706 = vpack.c.b16 %v532, %v526
  %v707 = vpack.c.b16 %v533, %v527
  %v708 = vpack.c.b16 %v534, %v528
  %v709 = vpack.c.b16 %v535, %v529
  %v710 = vpack.c.b16 %v536, %v530
  %v711 = vpack.c.b16 %v543, %v537
  %v712 = vpack.c.b16 %v544, %v538
  %v713 = vpack.c.b16 %v545, %v539
  %v714 = vpack.c.b16 %v546, %v540
  %v715 = vpack.c.b16 %v547, %v541
  %v716 = vpack.c.b16 %v548, %v542
  %v717 = vpack.c.b16 %v555, %v549
  %v718 = vpack.c.b16 %v556, %v550
  %v719 = vpack.c.b16 %v557, %v551
  %v720 = vpack.c.b16 %v558, %v552
  %v721 = vpack.c.b16 %v559, %v553
  %v722 = vpack.c.b16 %v560, %v554
  %v723 = vpack.c.b16 %v567, %v561
  %v724 = vpack.c.b16 %v568, %v562
  %v725 = vpack.c.b16 %v569, %v563
  %v726 = vpack.c.b16 %v570, %v564
  %v727 = vpack.c.b16 %v571, %v565
  %v728 = vpack.c.b16 %v572, %v566
  %v729 = vpack.c.b16 %v579, %v573
  %v730 = vpack.c.b16 %v580, %v574
  %v731 = vpack.c.b16 %v581, %v575
  %v732 = vpack.c.b16 %v582, %v576
  %v733 = vpack.c.b16 %v583, %v577
  %v734 = vpack.c.b16 %v584, %v578
  %v735 = vpack.c.b16 %v591, %v585
  %v736 = vpack.c.b16 %v592, %v586
  %v737 = vpack.c.b16 %v593, %v587
  %v738 = vpack.c.b16 %v594, %v588
  %v739 = vpack.c.b16 %v595, %v589
  %v740 = vpack.c.b16 %v596, %v590
  %v741 = vpack.c.b16 %v603, %v597
  %v742 = vpack.c.b16 %v604, %v598
  %v743 = vpack.c.b16 %v605, %v599
  %v744 = vpack.c.b16 %v606, %v600
  %v745 = vpack.c.b16 %v607, %v601
  %v746 = vpack.c.b16 %v608, %v602
  %v747 = vpack.c.b16 %v615, %v609
  %v748 = vpack.c.b16 %v616, %v610
  %v749 = vpack.c.b16 %v617, %v611
  %v750 = vpack.c.b16 %v618, %v612
  %v751 = vpack.c.b16 %v619, %v613
  %v752 = vpack.c.b16 %v620, %v614
  %v753 = vpack.c.b16 %v627, %v621
  %v754 = vpack.c.b16 %v628, %v622
  %v755 = vpack.c.b16 %v629, %v623
  %v756 = vpack.c.b16 %v630, %v624
  %v757 = vpack.c.b16 %v631, %v625
  %v758 = vpack.c.b16 %v632, %v626
  %v759 = vpack.c.b16 %v639, %v633
  %v760 = vpack.c.b16 %v640, %v634
  %v761 = vpack.c.b16 %v641, %v635
  %v762 = vpack.c.b16 %v642, %v636
  %v763 = vpack.c.b16 %v643, %v637
  %v764 = vpack.c.b16 %v644, %v638
  %v765 = vpack.c.b16 %v651, %v645
  %v766 = vpack.c.b16 %v652, %v646
  %v767 = vpack.c.b16 %v653, %v647
  %v768 = vpack.c.b16 %v654, %v648
  %v769 = vpack.c.b16 %v655, %v649
  %v770 = vpack.c.b16 %v656, %v650
  %v771 = vpack.c.b16 %v663, %v657
  %v772 = vpack.c.b16 %v664, %v658
  %v773 = vpack.c.b16 %v665, %v659
  %v774 = vpack.c.b16 %v666, %v660
  %v775 = vpack.c.b16 %v667, %v661
  %v776 = vpack.c.b16 %v668, %v662
  %v777 = vpack.c.b16 %v675, %v669
  %v778 = vpack.c.b16 %v676, %v670
  %v779 = vpack.c.b16 %v677, %v671
  %v780 = vpack.c.b16 %v678, %v672
  %v781 = vpack.c.b16 %v679, %v673
  %v782 = vpack.c.b16 %v680, %v674
  %v783 = vpack.c.b16 %v687, %v681
  %v784 = vpack.c.b16 %v688, %v682
  %v785 = vpack.c.b16 %v689, %v683
  %v786 = vpack.c.b16 %v690, %v684
  %v787 = vpack.c.b16 %v691, %v685
  %v788 = vpack.c.b16 %v692, %v686
  %885 = vmatprep.subr.bf16.mxu0 %v736
  %886 = vmatpush1.bf16.msra.mxu0 %v735
  %887 = vmatprep.subr.bf16.mxu0 %v730
  %888 = vmatpush1.bf16.msra.mxu0 %v729
  %889 = vmatprep.subr.bf16.mxu0 %v724
  %890 = vmatpush1.bf16.msra.mxu0 %v723
  %891 = vmatprep.subr.bf16.mxu0 %v718
  %892 = vmatpush1.bf16.msra.mxu0 %v717
  %893 = vmatprep.subr.bf16.mxu0 %v712
  %894 = vmatpush1.bf16.msra.mxu0 %v711
  %895 = vmatprep.subr.bf16.mxu0 %v706
  %896 = vmatpush1.bf16.msra.mxu0 %v705
  %897 = vmatprep.subr.bf16.mxu0 %v700
  %898 = vmatpush1.bf16.msra.mxu0 %v699
  %899 = vmatprep.subr.bf16.mxu0 %v694
  %900 = vmatpush1.bf16.msra.mxu0 %v693
  %901 = vmatprep.subr.bf16.mxu0 %v784
  %902 = vmatpush2.bf16.msra.mxu0 %v783
  %903 = vmatprep.subr.bf16.mxu0 %v778
  %904 = vmatpush2.bf16.msra.mxu0 %v777
  %905 = vmatprep.subr.bf16.mxu0 %v772
  %906 = vmatpush2.bf16.msra.mxu0 %v771
  %907 = vmatprep.subr.bf16.mxu0 %v766
  %908 = vmatpush2.bf16.msra.mxu0 %v765
  %909 = vmatprep.subr.bf16.mxu0 %v760
  %910 = vmatpush2.bf16.msra.mxu0 %v759
  %911 = vmatprep.subr.bf16.mxu0 %v754
  %912 = vmatpush2.bf16.msra.mxu0 %v753
  %913 = vmatprep.subr.bf16.mxu0 %v748
  %914 = vmatpush2.bf16.msra.mxu0 %v747
  %915 = vmatprep.subr.bf16.mxu0 %v742
  %916 = vmatpush2.bf16.msra.mxu0 %v741
  %917 = vmatprep.mubr.bf16.mxu0 %v402
  %918 = vmatmul.mubr.bf16.gmra.mxu0 %v401
  %v919 = vpop.f32.mrf.mxu0
  %v920 = vadd.f32 %v321, %v919
  %v921 = vpop.f32.mrf.mxu0
  %v922 = vadd.f32 %v325, %v921
  %v923 = vpop.f32.mrf.mxu0
  %v924 = vpop.f32.mrf.mxu0
  %925 = vdwg.mxu0
  %926 = vmatprep.subr.bf16.mxu0 %v738
  %927 = vmatpush1.bf16.msra.mxu0 %v737
  %928 = vmatprep.subr.bf16.mxu0 %v732
  %929 = vmatpush1.bf16.msra.mxu0 %v731
  %930 = vmatprep.subr.bf16.mxu0 %v726
  %931 = vmatpush1.bf16.msra.mxu0 %v725
  %932 = vmatprep.subr.bf16.mxu0 %v720
  %933 = vmatpush1.bf16.msra.mxu0 %v719
  %934 = vmatprep.subr.bf16.mxu0 %v714
  %935 = vmatpush1.bf16.msra.mxu0 %v713
  %936 = vmatprep.subr.bf16.mxu0 %v708
  %937 = vmatpush1.bf16.msra.mxu0 %v707
  %938 = vmatprep.subr.bf16.mxu0 %v702
  %939 = vmatpush1.bf16.msra.mxu0 %v701
  %940 = vmatprep.subr.bf16.mxu0 %v696
  %941 = vmatpush1.bf16.msra.mxu0 %v695
  %942 = vmatprep.subr.bf16.mxu0 %v786
  %943 = vmatpush2.bf16.msra.mxu0 %v785
  %944 = vmatprep.subr.bf16.mxu0 %v780
  %945 = vmatpush2.bf16.msra.mxu0 %v779
  %946 = vmatprep.subr.bf16.mxu0 %v774
  %947 = vmatpush2.bf16.msra.mxu0 %v773
  %948 = vmatprep.subr.bf16.mxu0 %v768
  %949 = vmatpush2.bf16.msra.mxu0 %v767
  %950 = vmatprep.subr.bf16.mxu0 %v762
  %951 = vmatpush2.bf16.msra.mxu0 %v761
  %952 = vmatprep.subr.bf16.mxu0 %v756
  %953 = vmatpush2.bf16.msra.mxu0 %v755
  %954 = vmatprep.subr.bf16.mxu0 %v750
  %955 = vmatpush2.bf16.msra.mxu0 %v749
  %956 = vmatprep.subr.bf16.mxu0 %v744
  %957 = vmatpush2.bf16.msra.mxu0 %v743
  %958 = vmatprep.mubr.bf16.mxu0 %v402
  %959 = vmatmul.mubr.bf16.gmra.mxu0 %v401
  %v960 = vpop.f32.mrf.mxu0
  %v961 = vadd.f32 %v329, %v960
  %v962 = vpop.f32.mrf.mxu0
  %v963 = vadd.f32 %v333, %v962
  %v964 = vpop.f32.mrf.mxu0
  %v965 = vpop.f32.mrf.mxu0
  %966 = vdwg.mxu0
  %967 = vmatprep.subr.bf16.mxu0 %v740
  %968 = vmatpush1.bf16.msra.mxu0 %v739
  %969 = vmatprep.subr.bf16.mxu0 %v734
  %970 = vmatpush1.bf16.msra.mxu0 %v733
  %971 = vmatprep.subr.bf16.mxu0 %v728
  %972 = vmatpush1.bf16.msra.mxu0 %v727
  %973 = vmatprep.subr.bf16.mxu0 %v722
  %974 = vmatpush1.bf16.msra.mxu0 %v721
  %975 = vmatprep.subr.bf16.mxu0 %v716
  %976 = vmatpush1.bf16.msra.mxu0 %v715
  %977 = vmatprep.subr.bf16.mxu0 %v710
  %978 = vmatpush1.bf16.msra.mxu0 %v709
  %979 = vmatprep.subr.bf16.mxu0 %v704
  %980 = vmatpush1.bf16.msra.mxu0 %v703
  %981 = vmatprep.subr.bf16.mxu0 %v698
  %982 = vmatpush1.bf16.msra.mxu0 %v697
  %983 = vmatprep.subr.bf16.mxu0 %v788
  %984 = vmatpush2.bf16.msra.mxu0 %v787
  %985 = vmatprep.subr.bf16.mxu0 %v782
  %986 = vmatpush2.bf16.msra.mxu0 %v781
  %987 = vmatprep.subr.bf16.mxu0 %v776
  %988 = vmatpush2.bf16.msra.mxu0 %v775
  %989 = vmatprep.subr.bf16.mxu0 %v770
  %990 = vmatpush2.bf16.msra.mxu0 %v769
  %991 = vmatprep.subr.bf16.mxu0 %v764
  %992 = vmatpush2.bf16.msra.mxu0 %v763
  %993 = vmatprep.subr.bf16.mxu0 %v758
  %994 = vmatpush2.bf16.msra.mxu0 %v757
  %995 = vmatprep.subr.bf16.mxu0 %v752
  %996 = vmatpush2.bf16.msra.mxu0 %v751
  %997 = vmatprep.subr.bf16.mxu0 %v746
  %998 = vmatpush2.bf16.msra.mxu0 %v745
  %999 = vmatprep.mubr.bf16.mxu0 %v402
  %1000 = vmatmul.mubr.bf16.gmra.mxu0 %v401
  %v1001 = vpop.f32.mrf.mxu0
  %v1002 = vadd.f32 %v337, %v1001
  %v1003 = vpop.f32.mrf.mxu0
  %v1004 = vadd.f32 %v341, %v1003
  %v1005 = vpop.f32.mrf.mxu0
  %v1006 = vpop.f32.mrf.mxu0
  %1007 = vdwg.mxu0
  %v1008 = vadd.f32 %v920, %v922
  %v1009 = vadd.f32 %v1008, %v961
  %v1010 = vadd.f32 %v1009, %v963
  %v1011 = vadd.f32 %v1010, %v1002
  %v1012 = vadd.f32 %v1011, %v1004
  %1013 = vadd.xlane.f32.xlu0 %v1012
  %v1014 = vpop.xlane.xlu0 %1013
  %v1015 = vrcp.pop 768.0
  %v1016 = vmul.f32 %v1014, %v1015
  %v1017 = vsub.f32 %v920, %v1016
  %v1018 = vsub.f32 %v922, %v1016
  %v1019 = vsub.f32 %v961, %v1016
  %v1020 = vsub.f32 %v963, %v1016
  %v1021 = vsub.f32 %v1002, %v1016
  %v1022 = vsub.f32 %v1004, %v1016
  %v1023 = vmul.f32 %v1017, %v1017
  %v1024 = vmul.f32 %v1018, %v1018
  %v1025 = vmul.f32 %v1019, %v1019
  %v1026 = vmul.f32 %v1020, %v1020
  %v1027 = vmul.f32 %v1021, %v1021
  %v1028 = vmul.f32 %v1022, %v1022
  %v1029 = vadd.f32 %v1023, %v1024
  %v1030 = vadd.f32 %v1029, %v1025
  %v1031 = vadd.f32 %v1030, %v1026
  %v1032 = vadd.f32 %v1031, %v1027
  %v1033 = vadd.f32 %v1032, %v1028
  %1034 = vadd.xlane.f32.xlu0 %v1033
  %v1035 = vpop.xlane.xlu0 %1034
  %v1036 = vmul.f32 %v1035, %v1015
  %v1037 = vadd.f32 %v1036, 1e-05
  %v1038 = vrsqrt.pop %v1037
  %v1039 = vmul.f32 %v1017, %v1038
  %v1040 = vmul.f32 %v1018, %v1038
  %v1041 = vmul.f32 %v1019, %v1038
  %v1042 = vmul.f32 %v1020, %v1038
  %v1043 = vmul.f32 %v1021, %v1038
  %v1044 = vmul.f32 %v1022, %v1038
  %v1045 = vld [vmem:[%s3] sm:$0x3f]
  %v1047 = vlaneseq
  %v1048 = vshrl.u32 %v1047, 7
  %v1049 = vsub.s32 0, %v1048
  %v1050 = vrot.slane %v1045, %v1049
  %v1051 = vlaneseq
  %v1052 = vshrl.u32 %v1051, 7
  %v1053 = vsub.s32 1, %v1052
  %v1054 = vrot.slane %v1045, %v1053
  %v1055 = vlaneseq
  %v1056 = vshrl.u32 %v1055, 7
  %v1057 = vsub.s32 2, %v1056
  %v1058 = vrot.slane %v1045, %v1057
  %v1059 = vlaneseq
  %v1060 = vshrl.u32 %v1059, 7
  %v1061 = vsub.s32 3, %v1060
  %v1062 = vrot.slane %v1045, %v1061
  %v1063 = vlaneseq
  %v1064 = vshrl.u32 %v1063, 7
  %v1065 = vsub.s32 4, %v1064
  %v1066 = vrot.slane %v1045, %v1065
  %v1067 = vlaneseq
  %v1068 = vshrl.u32 %v1067, 7
  %v1069 = vsub.s32 5, %v1068
  %v1070 = vrot.slane %v1045, %v1069
  %v1077 = vmul.f32 %v1039, %v1050
  %v1078 = vmul.f32 %v1040, %v1054
  %v1079 = vmul.f32 %v1041, %v1058
  %v1080 = vmul.f32 %v1042, %v1062
  %v1081 = vmul.f32 %v1043, %v1066
  %v1082 = vmul.f32 %v1044, %v1070
  %v1083 = vld [vmem:[%s4] sm:$0x3f]
  %v1085 = vlaneseq
  %v1086 = vshrl.u32 %v1085, 7
  %v1087 = vsub.s32 0, %v1086
  %v1088 = vrot.slane %v1083, %v1087
  %v1089 = vlaneseq
  %v1090 = vshrl.u32 %v1089, 7
  %v1091 = vsub.s32 1, %v1090
  %v1092 = vrot.slane %v1083, %v1091
  %v1093 = vlaneseq
  %v1094 = vshrl.u32 %v1093, 7
  %v1095 = vsub.s32 2, %v1094
  %v1096 = vrot.slane %v1083, %v1095
  %v1097 = vlaneseq
  %v1098 = vshrl.u32 %v1097, 7
  %v1099 = vsub.s32 3, %v1098
  %v1100 = vrot.slane %v1083, %v1099
  %v1101 = vlaneseq
  %v1102 = vshrl.u32 %v1101, 7
  %v1103 = vsub.s32 4, %v1102
  %v1104 = vrot.slane %v1083, %v1103
  %v1105 = vlaneseq
  %v1106 = vshrl.u32 %v1105, 7
  %v1107 = vsub.s32 5, %v1106
  %v1108 = vrot.slane %v1083, %v1107
  %v1115 = vadd.f32 %v1077, %v1088
  %v1116 = vadd.f32 %v1078, %v1092
  %v1117 = vadd.f32 %v1079, %v1096
  %v1118 = vadd.f32 %v1080, %v1100
  %v1119 = vadd.f32 %v1081, %v1104
  %v1120 = vadd.f32 %v1082, %v1108
  %v1121 = vpack.c.bf16 %v1115, %v1115
  %v1122 = vpack.c.bf16 %v1116, %v1116
  %v1123 = vpack.c.bf16 %v1117, %v1117
  %v1124 = vpack.c.bf16 %v1118, %v1118
  %v1125 = vpack.c.bf16 %v1119, %v1119
  %v1126 = vpack.c.bf16 %v1120, %v1120
  %v1127 = vld [vmem:[%s5] sm:$0xf]
  %v1128 = vld [vmem:[%s5 + $0x4] sm:$0xf]
  %v1129 = vld [vmem:[%s5 + $0x8] sm:$0xf]
  %v1130 = vld [vmem:[%s5 + $0xc] sm:$0xf]
  %v1131 = vld [vmem:[%s5 + $0x10] sm:$0xf]
  %v1132 = vld [vmem:[%s5 + $0x14] sm:$0xf]
  %v1133 = vld [vmem:[%s5 + $0x18] sm:$0xf]
  %v1134 = vld [vmem:[%s5 + $0x1c] sm:$0xf]
  %v1135 = vld [vmem:[%s5 + $0x20] sm:$0xf]
  %v1136 = vld [vmem:[%s5 + $0x24] sm:$0xf]
  %v1137 = vld [vmem:[%s5 + $0x28] sm:$0xf]
  %v1138 = vld [vmem:[%s5 + $0x2c] sm:$0xf]
  %v1139 = vld [vmem:[%s5 + $0x30] sm:$0xf]
  %v1140 = vld [vmem:[%s5 + $0x34] sm:$0xf]
  %v1141 = vld [vmem:[%s5 + $0x38] sm:$0xf]
  %v1142 = vld [vmem:[%s5 + $0x3c] sm:$0xf]
  %v1143 = vld [vmem:[%s5 + $0x40] sm:$0xf]
  %v1144 = vld [vmem:[%s5 + $0x44] sm:$0xf]
  %v1145 = vld [vmem:[%s5 + $0x48] sm:$0xf]
  %v1146 = vld [vmem:[%s5 + $0x4c] sm:$0xf]
  %v1147 = vld [vmem:[%s5 + $0x50] sm:$0xf]
  %v1148 = vld [vmem:[%s5 + $0x54] sm:$0xf]
  %v1149 = vld [vmem:[%s5 + $0x58] sm:$0xf]
  %v1150 = vld [vmem:[%s5 + $0x5c] sm:$0xf]
  %v1151 = vld [vmem:[%s5 + $0x60] sm:$0xf]
  %v1152 = vld [vmem:[%s5 + $0x64] sm:$0xf]
  %v1153 = vld [vmem:[%s5 + $0x68] sm:$0xf]
  %v1154 = vld [vmem:[%s5 + $0x6c] sm:$0xf]
  %v1155 = vld [vmem:[%s5 + $0x70] sm:$0xf]
  %v1156 = vld [vmem:[%s5 + $0x74] sm:$0xf]
  %v1157 = vld [vmem:[%s5 + $0x78] sm:$0xf]
  %v1158 = vld [vmem:[%s5 + $0x7c] sm:$0xf]
  %v1159 = vld [vmem:[%s5 + $0x80] sm:$0xf]
  %v1160 = vld [vmem:[%s5 + $0x84] sm:$0xf]
  %v1161 = vld [vmem:[%s5 + $0x88] sm:$0xf]
  %v1162 = vld [vmem:[%s5 + $0x8c] sm:$0xf]
  %v1163 = vld [vmem:[%s5 + $0x90] sm:$0xf]
  %v1164 = vld [vmem:[%s5 + $0x94] sm:$0xf]
  %v1165 = vld [vmem:[%s5 + $0x98] sm:$0xf]
  %v1166 = vld [vmem:[%s5 + $0x9c] sm:$0xf]
  %v1167 = vld [vmem:[%s5 + $0xa0] sm:$0xf]
  %v1168 = vld [vmem:[%s5 + $0xa4] sm:$0xf]
  %v1169 = vld [vmem:[%s5 + $0xa8] sm:$0xf]
  %v1170 = vld [vmem:[%s5 + $0xac] sm:$0xf]
  %v1171 = vld [vmem:[%s5 + $0xb0] sm:$0xf]
  %v1172 = vld [vmem:[%s5 + $0xb4] sm:$0xf]
  %v1173 = vld [vmem:[%s5 + $0xb8] sm:$0xf]
  %v1174 = vld [vmem:[%s5 + $0xbc] sm:$0xf]
  %v1175 = vld [vmem:[%s5 + $0xc0] sm:$0xf]
  %v1176 = vld [vmem:[%s5 + $0xc4] sm:$0xf]
  %v1177 = vld [vmem:[%s5 + $0xc8] sm:$0xf]
  %v1178 = vld [vmem:[%s5 + $0xcc] sm:$0xf]
  %v1179 = vld [vmem:[%s5 + $0xd0] sm:$0xf]
  %v1180 = vld [vmem:[%s5 + $0xd4] sm:$0xf]
  %v1181 = vld [vmem:[%s5 + $0xd8] sm:$0xf]
  %v1182 = vld [vmem:[%s5 + $0xdc] sm:$0xf]
  %v1183 = vld [vmem:[%s5 + $0xe0] sm:$0xf]
  %v1184 = vld [vmem:[%s5 + $0xe4] sm:$0xf]
  %v1185 = vld [vmem:[%s5 + $0xe8] sm:$0xf]
  %v1186 = vld [vmem:[%s5 + $0xec] sm:$0xf]
  %v1187 = vld [vmem:[%s5 + $0xf0] sm:$0xf]
  %v1188 = vld [vmem:[%s5 + $0xf4] sm:$0xf]
  %v1189 = vld [vmem:[%s5 + $0xf8] sm:$0xf]
  %v1190 = vld [vmem:[%s5 + $0xfc] sm:$0xf]
  %v1191 = vld [vmem:[%s5 + $0x100] sm:$0xf]
  %v1192 = vld [vmem:[%s5 + $0x104] sm:$0xf]
  %v1193 = vld [vmem:[%s5 + $0x108] sm:$0xf]
  %v1194 = vld [vmem:[%s5 + $0x10c] sm:$0xf]
  %v1195 = vld [vmem:[%s5 + $0x110] sm:$0xf]
  %v1196 = vld [vmem:[%s5 + $0x114] sm:$0xf]
  %v1197 = vld [vmem:[%s5 + $0x118] sm:$0xf]
  %v1198 = vld [vmem:[%s5 + $0x11c] sm:$0xf]
  %v1199 = vld [vmem:[%s5 + $0x120] sm:$0xf]
  %v1200 = vld [vmem:[%s5 + $0x124] sm:$0xf]
  %v1201 = vld [vmem:[%s5 + $0x128] sm:$0xf]
  %v1202 = vld [vmem:[%s5 + $0x12c] sm:$0xf]
  %v1203 = vld [vmem:[%s5 + $0x130] sm:$0xf]
  %v1204 = vld [vmem:[%s5 + $0x134] sm:$0xf]
  %v1205 = vld [vmem:[%s5 + $0x138] sm:$0xf]
  %v1206 = vld [vmem:[%s5 + $0x13c] sm:$0xf]
  %v1207 = vld [vmem:[%s5 + $0x140] sm:$0xf]
  %v1208 = vld [vmem:[%s5 + $0x144] sm:$0xf]
  %v1209 = vld [vmem:[%s5 + $0x148] sm:$0xf]
  %v1210 = vld [vmem:[%s5 + $0x14c] sm:$0xf]
  %v1211 = vld [vmem:[%s5 + $0x150] sm:$0xf]
  %v1212 = vld [vmem:[%s5 + $0x154] sm:$0xf]
  %v1213 = vld [vmem:[%s5 + $0x158] sm:$0xf]
  %v1214 = vld [vmem:[%s5 + $0x15c] sm:$0xf]
  %v1215 = vld [vmem:[%s5 + $0x160] sm:$0xf]
  %v1216 = vld [vmem:[%s5 + $0x164] sm:$0xf]
  %v1217 = vld [vmem:[%s5 + $0x168] sm:$0xf]
  %v1218 = vld [vmem:[%s5 + $0x16c] sm:$0xf]
  %v1219 = vld [vmem:[%s5 + $0x170] sm:$0xf]
  %v1220 = vld [vmem:[%s5 + $0x174] sm:$0xf]
  %v1221 = vld [vmem:[%s5 + $0x178] sm:$0xf]
  %v1222 = vld [vmem:[%s5 + $0x17c] sm:$0xf]
  %v1223 = vld [vmem:[%s6] sm:$0x1]
  %v1225 = vlaneseq
  %v1226 = vshrl.u32 %v1225, 7
  %v1227 = vsub.s32 0, %v1226
  %v1228 = vrot.slane %v1223, %v1227
  %v1326 = vunpack.c.l.b16 %v1127
  %v1327 = vunpack.c.l.b16 %v1128
  %v1328 = vunpack.c.l.b16 %v1129
  %v1329 = vunpack.c.l.b16 %v1130
  %v1330 = vunpack.c.l.b16 %v1131
  %v1331 = vunpack.c.l.b16 %v1132
  %v1332 = vunpack.c.l.b16 %v1133
  %v1333 = vunpack.c.l.b16 %v1134
  %v1334 = vunpack.c.l.b16 %v1135
  %v1335 = vunpack.c.l.b16 %v1136
  %v1336 = vunpack.c.l.b16 %v1137
  %v1337 = vunpack.c.l.b16 %v1138
  %v1338 = vunpack.c.l.b16 %v1139
  %v1339 = vunpack.c.l.b16 %v1140
  %v1340 = vunpack.c.l.b16 %v1141
  %v1341 = vunpack.c.l.b16 %v1142
  %v1342 = vunpack.c.l.b16 %v1143
  %v1343 = vunpack.c.l.b16 %v1144
  %v1344 = vunpack.c.l.b16 %v1145
  %v1345 = vunpack.c.l.b16 %v1146
  %v1346 = vunpack.c.l.b16 %v1147
  %v1347 = vunpack.c.l.b16 %v1148
  %v1348 = vunpack.c.l.b16 %v1149
  %v1349 = vunpack.c.l.b16 %v1150
  %v1350 = vunpack.c.l.b16 %v1151
  %v1351 = vunpack.c.l.b16 %v1152
  %v1352 = vunpack.c.l.b16 %v1153
  %v1353 = vunpack.c.l.b16 %v1154
  %v1354 = vunpack.c.l.b16 %v1155
  %v1355 = vunpack.c.l.b16 %v1156
  %v1356 = vunpack.c.l.b16 %v1157
  %v1357 = vunpack.c.l.b16 %v1158
  %v1358 = vunpack.c.l.b16 %v1159
  %v1359 = vunpack.c.l.b16 %v1160
  %v1360 = vunpack.c.l.b16 %v1161
  %v1361 = vunpack.c.l.b16 %v1162
  %v1362 = vunpack.c.l.b16 %v1163
  %v1363 = vunpack.c.l.b16 %v1164
  %v1364 = vunpack.c.l.b16 %v1165
  %v1365 = vunpack.c.l.b16 %v1166
  %v1366 = vunpack.c.l.b16 %v1167
  %v1367 = vunpack.c.l.b16 %v1168
  %v1368 = vunpack.c.l.b16 %v1169
  %v1369 = vunpack.c.l.b16 %v1170
  %v1370 = vunpack.c.l.b16 %v1171
  %v1371 = vunpack.c.l.b16 %v1172
  %v1372 = vunpack.c.l.b16 %v1173
  %v1373 = vunpack.c.l.b16 %v1174
  %v1374 = vunpack.c.l.b16 %v1175
  %v1375 = vunpack.c.l.b16 %v1176
  %v1376 = vunpack.c.l.b16 %v1177
  %v1377 = vunpack.c.l.b16 %v1178
  %v1378 = vunpack.c.l.b16 %v1179
  %v1379 = vunpack.c.l.b16 %v1180
  %v1380 = vunpack.c.l.b16 %v1181
  %v1381 = vunpack.c.l.b16 %v1182
  %v1382 = vunpack.c.l.b16 %v1183
  %v1383 = vunpack.c.l.b16 %v1184
  %v1384 = vunpack.c.l.b16 %v1185
  %v1385 = vunpack.c.l.b16 %v1186
  %v1386 = vunpack.c.l.b16 %v1187
  %v1387 = vunpack.c.l.b16 %v1188
  %v1388 = vunpack.c.l.b16 %v1189
  %v1389 = vunpack.c.l.b16 %v1190
  %v1390 = vunpack.c.l.b16 %v1191
  %v1391 = vunpack.c.l.b16 %v1192
  %v1392 = vunpack.c.l.b16 %v1193
  %v1393 = vunpack.c.l.b16 %v1194
  %v1394 = vunpack.c.l.b16 %v1195
  %v1395 = vunpack.c.l.b16 %v1196
  %v1396 = vunpack.c.l.b16 %v1197
  %v1397 = vunpack.c.l.b16 %v1198
  %v1398 = vunpack.c.l.b16 %v1199
  %v1399 = vunpack.c.l.b16 %v1200
  %v1400 = vunpack.c.l.b16 %v1201
  %v1401 = vunpack.c.l.b16 %v1202
  %v1402 = vunpack.c.l.b16 %v1203
  %v1403 = vunpack.c.l.b16 %v1204
  %v1404 = vunpack.c.l.b16 %v1205
  %v1405 = vunpack.c.l.b16 %v1206
  %v1406 = vunpack.c.l.b16 %v1207
  %v1407 = vunpack.c.l.b16 %v1208
  %v1408 = vunpack.c.l.b16 %v1209
  %v1409 = vunpack.c.l.b16 %v1210
  %v1410 = vunpack.c.l.b16 %v1211
  %v1411 = vunpack.c.l.b16 %v1212
  %v1412 = vunpack.c.l.b16 %v1213
  %v1413 = vunpack.c.l.b16 %v1214
  %v1414 = vunpack.c.l.b16 %v1215
  %v1415 = vunpack.c.l.b16 %v1216
  %v1416 = vunpack.c.l.b16 %v1217
  %v1417 = vunpack.c.l.b16 %v1218
  %v1418 = vunpack.c.l.b16 %v1219
  %v1419 = vunpack.c.l.b16 %v1220
  %v1420 = vunpack.c.l.b16 %v1221
  %v1421 = vunpack.c.l.b16 %v1222
  %v1422 = vpack.c.b16 %v1327, %v1326
  %v1423 = vpack.c.b16 %v1329, %v1328
  %v1424 = vpack.c.b16 %v1331, %v1330
  %v1425 = vpack.c.b16 %v1333, %v1332
  %v1426 = vpack.c.b16 %v1335, %v1334
  %v1427 = vpack.c.b16 %v1337, %v1336
  %v1428 = vpack.c.b16 %v1339, %v1338
  %v1429 = vpack.c.b16 %v1341, %v1340
  %v1430 = vpack.c.b16 %v1343, %v1342
  %v1431 = vpack.c.b16 %v1345, %v1344
  %v1432 = vpack.c.b16 %v1347, %v1346
  %v1433 = vpack.c.b16 %v1349, %v1348
  %v1434 = vpack.c.b16 %v1351, %v1350
  %v1435 = vpack.c.b16 %v1353, %v1352
  %v1436 = vpack.c.b16 %v1355, %v1354
  %v1437 = vpack.c.b16 %v1357, %v1356
  %v1438 = vpack.c.b16 %v1359, %v1358
  %v1439 = vpack.c.b16 %v1361, %v1360
  %v1440 = vpack.c.b16 %v1363, %v1362
  %v1441 = vpack.c.b16 %v1365, %v1364
  %v1442 = vpack.c.b16 %v1367, %v1366
  %v1443 = vpack.c.b16 %v1369, %v1368
  %v1444 = vpack.c.b16 %v1371, %v1370
  %v1445 = vpack.c.b16 %v1373, %v1372
  %v1446 = vpack.c.b16 %v1375, %v1374
  %v1447 = vpack.c.b16 %v1377, %v1376
  %v1448 = vpack.c.b16 %v1379, %v1378
  %v1449 = vpack.c.b16 %v1381, %v1380
  %v1450 = vpack.c.b16 %v1383, %v1382
  %v1451 = vpack.c.b16 %v1385, %v1384
  %v1452 = vpack.c.b16 %v1387, %v1386
  %v1453 = vpack.c.b16 %v1389, %v1388
  %v1454 = vpack.c.b16 %v1391, %v1390
  %v1455 = vpack.c.b16 %v1393, %v1392
  %v1456 = vpack.c.b16 %v1395, %v1394
  %v1457 = vpack.c.b16 %v1397, %v1396
  %v1458 = vpack.c.b16 %v1399, %v1398
  %v1459 = vpack.c.b16 %v1401, %v1400
  %v1460 = vpack.c.b16 %v1403, %v1402
  %v1461 = vpack.c.b16 %v1405, %v1404
  %v1462 = vpack.c.b16 %v1407, %v1406
  %v1463 = vpack.c.b16 %v1409, %v1408
  %v1464 = vpack.c.b16 %v1411, %v1410
  %v1465 = vpack.c.b16 %v1413, %v1412
  %v1466 = vpack.c.b16 %v1415, %v1414
  %v1467 = vpack.c.b16 %v1417, %v1416
  %v1468 = vpack.c.b16 %v1419, %v1418
  %v1469 = vpack.c.b16 %v1421, %v1420
  %1518 = vmatprep.subr.bf16.mxu0 0
  %1519 = vmatpush1.bf16.msra.mxu0 %v1429
  %1520 = vmatprep.subr.bf16.mxu0 0
  %1521 = vmatpush1.bf16.msra.mxu0 %v1428
  %1522 = vmatprep.subr.bf16.mxu0 0
  %1523 = vmatpush1.bf16.msra.mxu0 %v1427
  %1524 = vmatprep.subr.bf16.mxu0 0
  %1525 = vmatpush1.bf16.msra.mxu0 %v1426
  %1526 = vmatprep.subr.bf16.mxu0 0
  %1527 = vmatpush1.bf16.msra.mxu0 %v1425
  %1528 = vmatprep.subr.bf16.mxu0 0
  %1529 = vmatpush1.bf16.msra.mxu0 %v1424
  %1530 = vmatprep.subr.bf16.mxu0 0
  %1531 = vmatpush1.bf16.msra.mxu0 %v1423
  %1532 = vmatprep.subr.bf16.mxu0 0
  %1533 = vmatpush1.bf16.msra.mxu0 %v1422
  %1534 = vmatprep.subr.bf16.mxu0 0
  %1535 = vmatpush2.bf16.msra.mxu0 %v1437
  %1536 = vmatprep.subr.bf16.mxu0 0
  %1537 = vmatpush2.bf16.msra.mxu0 %v1436
  %1538 = vmatprep.subr.bf16.mxu0 0
  %1539 = vmatpush2.bf16.msra.mxu0 %v1435
  %1540 = vmatprep.subr.bf16.mxu0 0
  %1541 = vmatpush2.bf16.msra.mxu0 %v1434
  %1542 = vmatprep.subr.bf16.mxu0 0
  %1543 = vmatpush2.bf16.msra.mxu0 %v1433
  %1544 = vmatprep.subr.bf16.mxu0 0
  %1545 = vmatpush2.bf16.msra.mxu0 %v1432
  %1546 = vmatprep.subr.bf16.mxu0 0
  %1547 = vmatpush2.bf16.msra.mxu0 %v1431
  %1548 = vmatprep.subr.bf16.mxu0 0
  %1549 = vmatpush2.bf16.msra.mxu0 %v1430
  %1550 = vmatprep.mubr.bf16.mxu0 %v1122
  %1551 = vmatmul.mubr.bf16.gmra.mxu0 %v1121
  %v1552 = vpop.f32.mrf.mxu0
  %v1553 = vadd.f32 %v1228, %v1552
  %v1554 = vpop.f32.mrf.mxu0
  %v1555 = vpop.f32.mrf.mxu0
  %v1556 = vpop.f32.mrf.mxu0
  %1557 = vdwg.mxu0
  %1558 = vmatprep.subr.bf16.mxu0 0
  %1559 = vmatpush1.bf16.msra.mxu0 %v1445
  %1560 = vmatprep.subr.bf16.mxu0 0
  %1561 = vmatpush1.bf16.msra.mxu0 %v1444
  %1562 = vmatprep.subr.bf16.mxu0 0
  %1563 = vmatpush1.bf16.msra.mxu0 %v1443
  %1564 = vmatprep.subr.bf16.mxu0 0
  %1565 = vmatpush1.bf16.msra.mxu0 %v1442
  %1566 = vmatprep.subr.bf16.mxu0 0
  %1567 = vmatpush1.bf16.msra.mxu0 %v1441
  %1568 = vmatprep.subr.bf16.mxu0 0
  %1569 = vmatpush1.bf16.msra.mxu0 %v1440
  %1570 = vmatprep.subr.bf16.mxu0 0
  %1571 = vmatpush1.bf16.msra.mxu0 %v1439
  %1572 = vmatprep.subr.bf16.mxu0 0
  %1573 = vmatpush1.bf16.msra.mxu0 %v1438
  %1574 = vmatprep.subr.bf16.mxu0 0
  %1575 = vmatpush2.bf16.msra.mxu0 %v1453
  %1576 = vmatprep.subr.bf16.mxu0 0
  %1577 = vmatpush2.bf16.msra.mxu0 %v1452
  %1578 = vmatprep.subr.bf16.mxu0 0
  %1579 = vmatpush2.bf16.msra.mxu0 %v1451
  %1580 = vmatprep.subr.bf16.mxu0 0
  %1581 = vmatpush2.bf16.msra.mxu0 %v1450
  %1582 = vmatprep.subr.bf16.mxu0 0
  %1583 = vmatpush2.bf16.msra.mxu0 %v1449
  %1584 = vmatprep.subr.bf16.mxu0 0
  %1585 = vmatpush2.bf16.msra.mxu0 %v1448
  %1586 = vmatprep.subr.bf16.mxu0 0
  %1587 = vmatpush2.bf16.msra.mxu0 %v1447
  %1588 = vmatprep.subr.bf16.mxu0 0
  %1589 = vmatpush2.bf16.msra.mxu0 %v1446
  %1590 = vmatprep.mubr.bf16.mxu0 %v1124
  %1591 = vmatmul.mubr.bf16.gmra.mxu0 %v1123
  %v1592 = vpop.f32.mrf.mxu0
  %v1593 = vadd.f32 %v1553, %v1592
  %v1594 = vpop.f32.mrf.mxu0
  %v1595 = vpop.f32.mrf.mxu0
  %v1596 = vpop.f32.mrf.mxu0
  %1597 = vdwg.mxu0
  %1598 = vmatprep.subr.bf16.mxu0 0
  %1599 = vmatpush1.bf16.msra.mxu0 %v1461
  %1600 = vmatprep.subr.bf16.mxu0 0
  %1601 = vmatpush1.bf16.msra.mxu0 %v1460
  %1602 = vmatprep.subr.bf16.mxu0 0
  %1603 = vmatpush1.bf16.msra.mxu0 %v1459
  %1604 = vmatprep.subr.bf16.mxu0 0
  %1605 = vmatpush1.bf16.msra.mxu0 %v1458
  %1606 = vmatprep.subr.bf16.mxu0 0
  %1607 = vmatpush1.bf16.msra.mxu0 %v1457
  %1608 = vmatprep.subr.bf16.mxu0 0
  %1609 = vmatpush1.bf16.msra.mxu0 %v1456
  %1610 = vmatprep.subr.bf16.mxu0 0
  %1611 = vmatpush1.bf16.msra.mxu0 %v1455
  %1612 = vmatprep.subr.bf16.mxu0 0
  %1613 = vmatpush1.bf16.msra.mxu0 %v1454
  %1614 = vmatprep.subr.bf16.mxu0 0
  %1615 = vmatpush2.bf16.msra.mxu0 %v1469
  %1616 = vmatprep.subr.bf16.mxu0 0
  %1617 = vmatpush2.bf16.msra.mxu0 %v1468
  %1618 = vmatprep.subr.bf16.mxu0 0
  %1619 = vmatpush2.bf16.msra.mxu0 %v1467
  %1620 = vmatprep.subr.bf16.mxu0 0
  %1621 = vmatpush2.bf16.msra.mxu0 %v1466
  %1622 = vmatprep.subr.bf16.mxu0 0
  %1623 = vmatpush2.bf16.msra.mxu0 %v1465
  %1624 = vmatprep.subr.bf16.mxu0 0
  %1625 = vmatpush2.bf16.msra.mxu0 %v1464
  %1626 = vmatprep.subr.bf16.mxu0 0
  %1627 = vmatpush2.bf16.msra.mxu0 %v1463
  %1628 = vmatprep.subr.bf16.mxu0 0
  %1629 = vmatpush2.bf16.msra.mxu0 %v1462
  %1630 = vmatprep.mubr.bf16.mxu0 %v1126
  %1631 = vmatmul.mubr.bf16.gmra.mxu0 %v1125
  %v1632 = vpop.f32.mrf.mxu0
  %v1633 = vadd.f32 %v1593, %v1632
  %v1634 = vpop.f32.mrf.mxu0
  %v1635 = vpop.f32.mrf.mxu0
  %v1636 = vpop.f32.mrf.mxu0
  %1637 = vdwg.mxu0
  %1638 = vst [vmem:[%s7] sm:$0xff] %v1633
  // Predicated region
  $region30: #{blip2lp_forward.1} parent=0 // pred_check
    _
  $region31: #{blip2lp_forward.1} parent=0 // pred_check_branch
    %1640 = sbr.rel (0) target = $region33
  $region32: #{blip2lp_forward.1} parent=0 // pred_region
    _
  $region33: #{blip2lp_forward.1} parent=0 // pred_fallthru
    _
  // Predicated region
  $region34: #{blip2lp_forward.1} parent=0 // pred_check
    _
  $region35: #{blip2lp_forward.1} parent=0 // pred_check_branch
    %1642 = sbr.rel (0) target = $region37
  $region36: #{blip2lp_forward.1} parent=0 // pred_region
    _
  $region37: #{blip2lp_forward.1} parent=0 // pred_fallthru
    _

</llo_original>
